<compile_context>
chip_gen: v5e
topology: v5e:2x2
jax: 0.10.0
libtpu: 0.0.40
codegen_flags: <defaults>
</compile_context>

<pallas_src>
import jax
import jax.numpy as jnp
from jax.experimental import pallas as pl
from jax.experimental.pallas import tpu as pltpu

_VMEM_LIMIT_BYTES = 48 * 1024 * 1024   # scoped-VMEM limit passed to Mosaic
_VMEM_BUDGET_BYTES = 40 * 1024 * 1024  # working-set target (headroom vs. the limit)


def _round_up(x, m):
    return (x + m - 1) // m * m


def _round_down(x, m):
    return x // m * m


def _supports_pipeline_mode():
    # pl.Buffered(buffer_count=1) on a BlockSpec single-buffers an operand; probe for
    # the kwarg so the kernel still builds on older jax (default double-buffered specs).
    try:
        pl.BlockSpec((8, 128), lambda i: (0, 0),
                     pipeline_mode=pl.Buffered(buffer_count=1))
        return True
    except (AttributeError, TypeError):
        return False


_SINGLE_BUFFER = _supports_pipeline_mode()


def _block_spec(block_shape, index_map, *, single_buffer=False):
    if single_buffer and _SINGLE_BUFFER:
        return pl.BlockSpec(block_shape, index_map,
                            pipeline_mode=pl.Buffered(buffer_count=1))
    return pl.BlockSpec(block_shape, index_map)


def _mlp_kernel(x_ref, w1_ref, b1_ref, w2_ref, b2_ref, out_ref, emb_ref, acc_ref):
    """grid = (row_tiles, k_tiles); K (the flatten dim) is the last, 'arbitrary' axis."""
    k = pl.program_id(1)

    @pl.when(k == 0)
    def _():
        acc_ref[...] = jnp.zeros_like(acc_ref)

    # lm1 partial product on the MXU, f32 accumulation in VMEM scratch.
    acc_ref[...] += jnp.dot(x_ref[...], w1_ref[...],
                            preferred_element_type=jnp.float32)

    @pl.when(k == pl.num_programs(1) - 1)
    def _():
        # lm1 epilogue: bias + ReLU on the VPU, then lm2 on the MXU.
        emb = jnp.maximum(acc_ref[...] + b1_ref[...], 0.0)
        emb_ref[...] = emb.astype(emb_ref.dtype)
        o = jnp.dot(emb.astype(w2_ref.dtype), w2_ref[...],
                    preferred_element_type=jnp.float32)
        out_ref[...] = (o + b2_ref[...]).astype(out_ref.dtype)


def prepare_params(w1, b1, w2, b2, *, use_bf16=False):
    """One-time parameter prep (call OUTSIDE the jitted forward so the pad/cast is not
    re-done every step): pads the class dim of W2/b2 up to a multiple of 128 lanes
    (lane-dense stores in the kernel) and optionally pre-casts the matmul weights to
    bf16 (in-kernel accumulation stays f32).  Returns (w1, b1, w2_pad, b2_pad, n_classes).
    """
    emb_size, n_classes = w2.shape
    b1 = b1.reshape(1, -1)
    b2 = b2.reshape(1, -1)
    n_pad = _round_up(n_classes, 128)
    if n_pad != n_classes:
        w2 = jnp.zeros((emb_size, n_pad), w2.dtype).at[:, :n_classes].set(w2)
        b2 = jnp.zeros((1, n_pad), b2.dtype).at[:, :n_classes].set(b2)
    if use_bf16:
        w1 = w1.astype(jnp.bfloat16)
        w2 = w2.astype(jnp.bfloat16)
    return w1, b1, w2, b2, n_classes


def mlp_mod_forward(x, w1, b1, w2, b2, *, n_classes=None, block_rows=1024,
                    block_k=512, use_bf16=False, emb_dtype=jnp.float32,
                    force_k_tiling=False):
    """Fused mlpMod forward. Returns (out[B, n_classes], emb[B, embSize]).

    x:  [B, C, H, W] (or any [B, ...] whose trailing dims flatten to w1.shape[0]).
    w1: [dim, embSize]; b1: [embSize] or [1, embSize];
    w2: [embSize, nClasses] (optionally pre-padded to a multiple of 128 via
        prepare_params -- then pass the true n_classes); b2: [nClasses] or [1, nClasses].
    block_rows: upper bound on the batch (row) tile; the actual tile is sized from a
        VMEM working-set model.  block_k: K tile used when W1 cannot stay resident.
    use_bf16: cast X/W1/W2 to bf16 (f32 accumulation) -- halves HBM bytes and gives
        much higher MXU throughput on v5e/v6e/v7x, at bf16 operand precision.
    """
    dim, emb_size = w1.shape
    B = x.shape[0]
    x2d = x.reshape(B, dim)                          # same as torch .view(-1, dim)
    b1 = b1.reshape(1, emb_size)
    b2 = b2.reshape(1, -1)

    if n_classes is None:
        n_classes = w2.shape[1]

    # Lane-dense output: class dim padded to a multiple of 128 (prefer prepare_params).
    n_pad = _round_up(w2.shape[1], 128)
    if n_pad != w2.shape[1]:
        w2 = jnp.zeros((emb_size, n_pad), w2.dtype).at[:, :w2.shape[1]].set(w2)
        b2 = jnp.zeros((1, n_pad), b2.dtype).at[:, :b2.shape[1]].set(b2)

    if use_bf16:
        x2d = x2d.astype(jnp.bfloat16)
        w1 = w1.astype(jnp.bfloat16)                 # no-op if pre-cast in prepare_params
        w2 = w2.astype(jnp.bfloat16)

    in_it = x2d.dtype.itemsize
    w1_it = w1.dtype.itemsize
    w2_it = w2.dtype.itemsize
    emb_it = jnp.dtype(emb_dtype).itemsize
    row_align = 16 if in_it == 2 else 8              # bf16 packs 2 rows per sublane
    w_bufs = 1 if _SINGLE_BUFFER else 2              # resident operands single-buffered

    def working_set(tk, w1_resident):
        # VMEM model (bytes): resident weights + streamed W1 tile + per-row streaming.
        fixed = ((w_bufs if w1_resident else 2) * tk * emb_size * w1_it
                 + w_bufs * (emb_size * b1.dtype.itemsize
                             + emb_size * n_pad * w2_it
                             + n_pad * b2.dtype.itemsize))
        per_row = (2 * tk * in_it             # X tile (double-buffered)
                   + 2 * n_pad * 4            # out tile (double-buffered, f32)
                   + 2 * emb_size * emb_it    # emb tile (double-buffered)
                   + emb_size * 4             # f32 accumulator scratch
                   + n_pad * 4)               # headroom for the lm2 result
        return fixed, per_row

    # Keep W1 fully resident when it (plus a useful number of rows) fits the budget;
    # otherwise K-tile the first matmul (needed earliest on v7x's 64 MiB VMEM).
    fixed, per_row = working_set(dim, w1_resident=True)
    k_tiled = force_k_tiling or (fixed + 128 * per_row > _VMEM_BUDGET_BYTES)
    if k_tiled:
        tk = min(_round_up(block_k, 128), _round_up(dim, 128))
        fixed, per_row = working_set(tk, w1_resident=False)
    else:
        tk = dim
    dim_pad = _round_up(dim, tk)
    nk = dim_pad // tk

    # Row tile: as large as the VMEM budget allows, capped by block_rows and the batch.
    tm_cap = max(row_align, (_VMEM_BUDGET_BYTES - fixed) // per_row)
    tm = min(block_rows, tm_cap, _round_up(B, row_align))
    tm = max(row_align, _round_down(tm, row_align))
    if tm >= 256:
        tm = _round_down(tm, 128)
    # Keep >= 2 row steps for large batches so ("parallel", ...) lets v7x's two
    # TensorCores split the batch (a 1-step grid pins all work on one core).
    b_ceil = _round_up(B, row_align)
    if b_ceil >= 512 and tm > _round_down(b_ceil // 2, row_align):
        tm = max(row_align, _round_down(b_ceil // 2, row_align))
    b_pad = _round_up(B, tm)

    if b_pad != B or dim_pad != dim:
        x2d = jnp.zeros((b_pad, dim_pad), x2d.dtype).at[:B, :dim].set(x2d)
    if dim_pad != dim:
        # For very large dims, pre-pad W1 once at parameter-setup time instead.
        w1 = jnp.zeros((dim_pad, emb_size), w1.dtype).at[:dim, :].set(w1)

    grid = (b_pad // tm, nk)
    flops = 2 * b_pad * dim_pad * emb_size + 2 * b_pad * emb_size * n_pad
    bytes_accessed = (x2d.size * in_it + w1.size * w1_it + w2.size * w2_it
                      + b1.size * b1.dtype.itemsize + b2.size * b2.dtype.itemsize
                      + b_pad * n_pad * 4 + b_pad * emb_size * emb_it)

    out_p, emb_p = pl.pallas_call(
        _mlp_kernel,
        out_shape=(
            jax.ShapeDtypeStruct((b_pad, n_pad), jnp.float32),
            jax.ShapeDtypeStruct((b_pad, emb_size), emb_dtype),
        ),
        grid=grid,
        in_specs=[
            _block_spec((tm, tk), lambda i, k: (i, k)),                # X: streamed
            _block_spec((tk, emb_size), lambda i, k: (k, 0),
                        single_buffer=(nk == 1)),                      # W1
            _block_spec((1, emb_size), lambda i, k: (0, 0),
                        single_buffer=True),                           # b1: resident
            _block_spec((emb_size, n_pad), lambda i, k: (0, 0),
                        single_buffer=True),                           # W2: resident
            _block_spec((1, n_pad), lambda i, k: (0, 0),
                        single_buffer=True),                           # b2: resident
        ],
        out_specs=(
            pl.BlockSpec((tm, n_pad), lambda i, k: (i, 0)),      # out: resident over K
            pl.BlockSpec((tm, emb_size), lambda i, k: (i, 0)),   # emb: resident over K
        ),
        scratch_shapes=[pltpu.VMEM((tm, emb_size), jnp.float32)],
        compiler_params=pltpu.CompilerParams(
            dimension_semantics=("parallel", "arbitrary"),
            vmem_limit_bytes=_VMEM_LIMIT_BYTES),
        cost_estimate=pl.CostEstimate(
            flops=flops, transcendentals=0, bytes_accessed=bytes_accessed),
    )(x2d, w1, b1, w2, b2)

    # Padded batch rows hold relu(b1) @ W2 + b2 (not zeros); they are sliced off here.
    return out_p[:B, :n_classes], emb_p[:B, :]


if __name__ == "__main__":
    # Shapes consistent with the module: x = [2, 4, 16, 16] -> dim = C*H*W = 1024.
    B, C, H, W = 2, 4, 16, 16
    dim = C * H * W
    emb_size = 256
    n_classes = 10                       # stand-in for opts.nClasses

    key = jax.random.PRNGKey(0)
    kx, kw1, kb1, kw2, kb2 = jax.random.split(key, 5)
    s1 = 1.0 / (dim ** 0.5)
    s2 = 1.0 / (emb_size ** 0.5)

    x = jax.random.normal(kx, (B, C, H, W), dtype=jnp.float32)
    w1 = jax.random.uniform(kw1, (dim, emb_size), jnp.float32, -s1, s1)
    b1 = jax.random.uniform(kb1, (1, emb_size), jnp.float32, -s1, s1)
    w2 = jax.random.uniform(kw2, (emb_size, n_classes), jnp.float32, -s2, s2)
    b2 = jax.random.uniform(kb2, (1, n_classes), jnp.float32, -s2, s2)

    # Pure-JAX reference (f32, mirrors the PyTorch module).
    emb_ref = jnp.maximum(x.reshape(B, dim) @ w1 + b1, 0.0)
    out_ref = emb_ref @ w2 + b2

    # One-time parameter prep (W2/b2 lane padding) outside the jitted forward.
    w1p, b1p, w2p, b2p, nc = prepare_params(w1, b1, w2, b2)

    # 1) f32 fused path (resident W1), toy batch.
    fwd = jax.jit(lambda xx, a, b, c, d: mlp_mod_forward(xx, a, b, c, d, n_classes=nc))
    out, emb = fwd(x, w1p, b1p, w2p, b2p)
    jax.block_until_ready((out, emb))
    assert out.shape == (B, n_classes) and emb.shape == (B, emb_size)
    assert jnp.allclose(emb, emb_ref, atol=1e-4, rtol=1e-4)
    assert jnp.allclose(out, out_ref, atol=1e-4, rtol=1e-4)

    # 2) f32, larger batch with a small row tile -> multi-step "parallel" row grid
    #    (exercises the single-buffered resident weights across grid steps).
    Bb = 64
    xb = jax.random.normal(jax.random.PRNGKey(1), (Bb, C, H, W), dtype=jnp.float32)
    embb_ref = jnp.maximum(xb.reshape(Bb, dim) @ w1 + b1, 0.0)
    outb_ref = embb_ref @ w2 + b2
    fwd_rows = jax.jit(lambda xx, a, b, c, d: mlp_mod_forward(
        xx, a, b, c, d, n_classes=nc, block_rows=16))
    outb, embb = fwd_rows(xb, w1p, b1p, w2p, b2p)
    jax.block_until_ready((outb, embb))
    assert jnp.allclose(embb, embb_ref, atol=1e-4, rtol=1e-4)
    assert jnp.allclose(outb, outb_ref, atol=1e-4, rtol=1e-4)

    # 3) Forced K-tiled path (accumulator + pl.when init/finalize), as used when the
    #    flatten dim is too large for W1 to stay resident (earliest on v7x).
    fwd_kt = jax.jit(lambda xx, a, b, c, d: mlp_mod_forward(
        xx, a, b, c, d, n_classes=nc, block_rows=16, block_k=256, force_k_tiling=True))
    outk, embk = fwd_kt(xb, w1p, b1p, w2p, b2p)
    jax.block_until_ready((outk, embk))
    assert jnp.allclose(embk, embb_ref, atol=1e-4, rtol=1e-4)
    assert jnp.allclose(outk, outb_ref, atol=1e-4, rtol=1e-4)

    # 4) bf16 operands (f32 accumulation): bandwidth / MXU-throughput option.
    #    Looser tolerance: operands are rounded to bf16 before the matmuls.
    w1b, b1b, w2b, b2b, _ = prepare_params(w1, b1, w2, b2, use_bf16=True)
    fwd_bf16 = jax.jit(lambda xx, a, b, c, d: mlp_mod_forward(
        xx, a, b, c, d, n_classes=nc, use_bf16=True))
    outh, embh = fwd_bf16(x, w1b, b1b, w2b, b2b)
    jax.block_until_ready((outh, embh))
    assert jnp.allclose(embh, emb_ref, atol=1e-1, rtol=1e-1)
    assert jnp.allclose(outh, out_ref, atol=1e-1, rtol=1e-1)

    print("KERNEL_OK")
</pallas_src>

<mosaic_0001>
module attributes {stable_mosaic.version = 11 : i64} {
  func.func @_mlp_kernel(%arg0: i32, %arg1: i32, %arg2: memref<8x1024xf32, #tpu.memory_space<vmem>>, %arg3: memref<1024x256xf32, #tpu.memory_space<vmem>>, %arg4: memref<1x256xf32, #tpu.memory_space<vmem>>, %arg5: memref<256x128xf32, #tpu.memory_space<vmem>>, %arg6: memref<1x128xf32, #tpu.memory_space<vmem>>, %arg7: memref<8x128xf32, #tpu.memory_space<vmem>>, %arg8: memref<8x256xf32, #tpu.memory_space<vmem>>, %arg9: memref<8x256xf32, #tpu.memory_space<vmem>>) attributes {dimension_semantics = [#tpu.dimension_semantics<parallel>, #tpu.dimension_semantics<arbitrary>], iteration_bounds = array<i64: 1, 1>, scalar_prefetch = 0 : i64, scratch_operands = 1 : i64, tpu.core_type = #tpu.core_type<tc>, window_params = [{transform_indices = @transform_0, window_bounds = array<i64: 8, 1024>}, {pipeline_mode = #tpu.pipeline_mode<synchronous>, transform_indices = @transform_1, window_bounds = array<i64: 1024, 256>}, {pipeline_mode = #tpu.pipeline_mode<synchronous>, transform_indices = @transform_2, window_bounds = array<i64: 1, 256>}, {pipeline_mode = #tpu.pipeline_mode<synchronous>, transform_indices = @transform_3, window_bounds = array<i64: 256, 128>}, {pipeline_mode = #tpu.pipeline_mode<synchronous>, transform_indices = @transform_4, window_bounds = array<i64: 1, 128>}, {transform_indices = @transform_5, window_bounds = array<i64: 8, 128>}, {transform_indices = @transform_6, window_bounds = array<i64: 8, 256>}]} {
    %c0_i32 = arith.constant 0 : i32
    %0 = arith.cmpi eq, %arg1, %c0_i32 : i32
    %1 = arith.extui %0 : i1 to i32
    %c0_i32_0 = arith.constant 0 : i32
    %2 = arith.cmpi ne, %1, %c0_i32_0 : i32
    scf.if %2 {
      %cst_10 = arith.constant 0.000000e+00 : f32
      %12 = vector.broadcast %cst_10 : f32 to vector<8x256xf32>
      %c0_11 = arith.constant 0 : index
      %c0_12 = arith.constant 0 : index
      %13 = vector.load %arg9[%c0_11, %c0_12] : memref<8x256xf32, #tpu.memory_space<vmem>>, vector<8x256xf32>
      tpu.vector_store %arg9[%c0_11, %c0_12], %12 {strides = array<i32>} : memref<8x256xf32, #tpu.memory_space<vmem>>, vector<8x256xf32>,
    } else {
    }
    %c0 = arith.constant 0 : index
    %c0_1 = arith.constant 0 : index
    %3 = vector.load %arg9[%c0, %c0_1] : memref<8x256xf32, #tpu.memory_space<vmem>>, vector<8x256xf32>
    %c0_2 = arith.constant 0 : index
    %c0_3 = arith.constant 0 : index
    %4 = vector.load %arg2[%c0_2, %c0_3] : memref<8x1024xf32, #tpu.memory_space<vmem>>, vector<8x1024xf32>
    %c0_4 = arith.constant 0 : index
    %c0_5 = arith.constant 0 : index
    %5 = vector.load %arg3[%c0_4, %c0_5] : memref<1024x256xf32, #tpu.memory_space<vmem>>, vector<1024x256xf32>
    %cst = arith.constant dense<0.000000e+00> : vector<8x256xf32>
    %6 = tpu.matmul %4, %5, %cst {dimension_numbers = #tpu.dot_dimension_numbers<[1], [0], [0], [1], [0, 0, 1, 1], [], []>} : vector<8x1024xf32>, vector<1024x256xf32>, vector<8x256xf32> -> vector<8x256xf32>
    %7 = arith.addf %3, %6 : vector<8x256xf32>
    %c0_6 = arith.constant 0 : index
    %c0_7 = arith.constant 0 : index
    %8 = vector.load %arg9[%c0_6, %c0_7] : memref<8x256xf32, #tpu.memory_space<vmem>>, vector<8x256xf32>
    tpu.vector_store %arg9[%c0_6, %c0_7], %7 {strides = array<i32>} : memref<8x256xf32, #tpu.memory_space<vmem>>, vector<8x256xf32>,
    %c0_i32_8 = arith.constant 0 : i32
    %9 = arith.cmpi eq, %arg1, %c0_i32_8 : i32
    %10 = arith.extui %9 : i1 to i32
    %c0_i32_9 = arith.constant 0 : i32
    %11 = arith.cmpi ne, %10, %c0_i32_9 : i32
    scf.if %11 {
      %c0_10 = arith.constant 0 : index
      %c0_11 = arith.constant 0 : index
      %12 = vector.load %arg9[%c0_10, %c0_11] : memref<8x256xf32, #tpu.memory_space<vmem>>, vector<8x256xf32>
      %c0_12 = arith.constant 0 : index
      %c0_13 = arith.constant 0 : index
      %13 = vector.load %arg4[%c0_12, %c0_13] : memref<1x256xf32, #tpu.memory_space<vmem>>, vector<1x256xf32>
      %14 = vector.broadcast %13 : vector<1x256xf32> to vector<8x256xf32>
      %15 = arith.addf %12, %14 : vector<8x256xf32>
      %cst_14 = arith.constant 0.000000e+00 : f32
      %16 = vector.broadcast %cst_14 : f32 to vector<8x256xf32>
      %17 = arith.maximumf %15, %16 : vector<8x256xf32>
      %c0_15 = arith.constant 0 : index
      %c0_16 = arith.constant 0 : index
      %18 = vector.load %arg8[%c0_15, %c0_16] : memref<8x256xf32, #tpu.memory_space<vmem>>, vector<8x256xf32>
      tpu.vector_store %arg8[%c0_15, %c0_16], %17 {strides = array<i32>} : memref<8x256xf32, #tpu.memory_space<vmem>>, vector<8x256xf32>,
      %c0_17 = arith.constant 0 : index
      %c0_18 = arith.constant 0 : index
      %19 = vector.load %arg5[%c0_17, %c0_18] : memref<256x128xf32, #tpu.memory_space<vmem>>, vector<256x128xf32>
      %cst_19 = arith.constant dense<0.000000e+00> : vector<8x128xf32>
      %20 = tpu.matmul %17, %19, %cst_19 {dimension_numbers = #tpu.dot_dimension_numbers<[1], [0], [0], [1], [0, 0, 1, 1], [], []>} : vector<8x256xf32>, vector<256x128xf32>, vector<8x128xf32> -> vector<8x128xf32>
      %c0_20 = arith.constant 0 : index
      %c0_21 = arith.constant 0 : index
      %21 = vector.load %arg6[%c0_20, %c0_21] : memref<1x128xf32, #tpu.memory_space<vmem>>, vector<1x128xf32>
      %22 = vector.broadcast %21 : vector<1x128xf32> to vector<8x128xf32>
      %23 = arith.addf %20, %22 : vector<8x128xf32>
      %c0_22 = arith.constant 0 : index
      %c0_23 = arith.constant 0 : index
      %24 = vector.load %arg7[%c0_22, %c0_23] : memref<8x128xf32, #tpu.memory_space<vmem>>, vector<8x128xf32>
      tpu.vector_store %arg7[%c0_22, %c0_23], %23 {strides = array<i32>} : memref<8x128xf32, #tpu.memory_space<vmem>>, vector<8x128xf32>,
    } else {
    }
    return
  }
  func.func @transform_0(%arg0: i32, %arg1: i32) -> (i32, i32) {
    %c0_i32 = arith.constant 0 : i32
    return %arg0, %arg1 : i32, i32
  }
  func.func @transform_1(%arg0: i32, %arg1: i32) -> (i32, i32) {
    %c0_i32 = arith.constant 0 : i32
    %c0_i32_0 = arith.constant 0 : i32
    return %arg1, %c0_i32 : i32, i32
  }
  func.func @transform_2(%arg0: i32, %arg1: i32) -> (i32, i32) {
    %c0_i32 = arith.constant 0 : i32
    %c0_i32_0 = arith.constant 0 : i32
    %c0_i32_1 = arith.constant 0 : i32
    return %c0_i32, %c0_i32_0 : i32, i32
  }
  func.func @transform_3(%arg0: i32, %arg1: i32) -> (i32, i32) {
    %c0_i32 = arith.constant 0 : i32
    %c0_i32_0 = arith.constant 0 : i32
    %c0_i32_1 = arith.constant 0 : i32
    return %c0_i32, %c0_i32_0 : i32, i32
  }
  func.func @transform_4(%arg0: i32, %arg1: i32) -> (i32, i32) {
    %c0_i32 = arith.constant 0 : i32
    %c0_i32_0 = arith.constant 0 : i32
    %c0_i32_1 = arith.constant 0 : i32
    return %c0_i32, %c0_i32_0 : i32, i32
  }
  func.func @transform_5(%arg0: i32, %arg1: i32) -> (i32, i32) {
    %c0_i32 = arith.constant 0 : i32
    %c0_i32_0 = arith.constant 0 : i32
    return %arg0, %c0_i32 : i32, i32
  }
  func.func @transform_6(%arg0: i32, %arg1: i32) -> (i32, i32) {
    %c0_i32 = arith.constant 0 : i32
    %c0_i32_0 = arith.constant 0 : i32
    return %arg0, %c0_i32 : i32, i32
  }
}

</mosaic_0001>

<llo_original>
// kernel: _lambda_.1
$region0: #{_lambda_.1}
  #allocation0 [shape = 'u32[]', space=smem, size = 0x4, offset = 0x4, fixed_abs, tag = 'smem constant byte address 0x4 - core index']
  #allocation1 [shape = 'u32[72,128]{1,0:T(1,128)}', space=vmem, size = 0x9000, scoped, tag = 'internal scratch']
  #allocation2 [shape = 'f32[8,256]{1,0:T(8,128)}', space=vmem, size = 0x2000, scoped, tag = 'scratch operand']
  %s0 = inlined_call_operand.vmem [shape: f32[8,1024], index: 0, kind: input, shape index: {}]
  %s1 = inlined_call_operand.hbm [shape: f32[1024,256], index: 1, kind: input, shape index: {}]
  %s2 = inlined_call_operand.vmem [shape: f32[1,256], index: 2, kind: input, shape index: {}]
  %s3 = inlined_call_operand.hbm [shape: f32[256,128], index: 3, kind: input, shape index: {}]
  %s4 = inlined_call_operand.vmem [shape: f32[1,128], index: 4, kind: input, shape index: {}]
  %s5 = inlined_call_operand.vmem [shape: f32[8,128], index: 5, kind: output, shape index: {0}]
  %s6 = inlined_call_operand.vmem [shape: f32[8,256], index: 6, kind: output, shape index: {1}]
  %7 = xla_tuple %s5, %s6
  %s8 = sld [smem:[#allocation0]]
  $region54: #{_lambda_.1} parent=0
    _
  %s10 = ssub.s32 1, %s8
  %s11 = scalar_select 0, %s10, %s8
  $region1: #{_lambda_.1} parent=0
    #allocation3 [shape = 'u8[1048576]{0}', space=vmem, size = 0x100000, scoped, tag = 'input window, operand 1, single buffered']
    #allocation4 [shape = 's32[1]{0}', space=sflag, size = 0x4, scoped, tag = 'scoped memory for _lambda_.1']
    #allocation5 [shape = 'u8[131072]{0}', space=vmem, size = 0x20000, scoped, tag = 'input window, operand 3, single buffered']
    #allocation6 [shape = 's32[1]{0}', space=sflag, size = 0x4, scoped, tag = 'scoped memory for _lambda_.1']
    %12 = vsyncpa [#allocation4], 0
    %13 = vsyncpa [#allocation6], 0
    // Predicated region
    $region2: #{_lambda_.1} parent=1 // pred_check
      _
    $region3: #{_lambda_.1} parent=1 // pred_check_branch
      %15 = sbr.rel (0) target = $region5
    $region4: #{_lambda_.1} parent=1 // pred_region
      _
    $region5: #{_lambda_.1} parent=1 // pred_fallthru
      _
    // Predicated region
    $region6: #{_lambda_.1} parent=1 // pred_check
      _
    $region7: #{_lambda_.1} parent=1 // pred_check_branch
      %17 = sbr.rel (0) target = $region9
    $region8: #{_lambda_.1} parent=1 // pred_region
      %19 = vsyncadd [#allocation4], 0
      %s20 = sshll.u32 %s1, 4
      %s21 = int_to_ptr.hbm [resolvable:$true] %s20
      %s22 = sshll.u32 [#allocation3], 4
      %s23 = int_to_ptr.vmem [resolvable:$true] %s22
      %28 = dma.hbm_to_vmem [thread:$0]  %s21, 32768, %s23, [#allocation4], 256, 256, 16
    $region9: #{_lambda_.1} parent=1 // pred_fallthru
      _
    // Predicated region
    $region10: #{_lambda_.1} parent=1 // pred_check
      _
    $region11: #{_lambda_.1} parent=1 // pred_check_branch
      %30 = sbr.rel (0) target = $region13
    $region12: #{_lambda_.1} parent=1 // pred_region
      _
    $region13: #{_lambda_.1} parent=1 // pred_fallthru
      _
    // Predicated region
    $region14: #{_lambda_.1} parent=1 // pred_check
      _
    $region15: #{_lambda_.1} parent=1 // pred_check_branch
      %32 = sbr.rel (0) target = $region17
    $region16: #{_lambda_.1} parent=1 // pred_region
      %34 = vsyncadd [#allocation6], 0
      %s35 = sshll.u32 %s3, 4
      %s36 = int_to_ptr.hbm [resolvable:$true] %s35
      %s37 = sshll.u32 [#allocation5], 4
      %s38 = int_to_ptr.vmem [resolvable:$true] %s37
      %43 = dma.hbm_to_vmem [thread:$0]  %s36, 4096, %s38, [#allocation6], 128, 128, 8
    $region17: #{_lambda_.1} parent=1 // pred_fallthru
      _
    // Predicated region
    $region18: #{_lambda_.1} parent=1 // pred_check
      _
    $region19: #{_lambda_.1} parent=1 // pred_check_branch
      %45 = sbr.rel (0) target = $region21
    $region20: #{_lambda_.1} parent=1 // pred_region
      _
    $region21: #{_lambda_.1} parent=1 // pred_fallthru
      _
    // Predicated region
    $region22: #{_lambda_.1} parent=1 // pred_check
      _
    $region23: #{_lambda_.1} parent=1 // pred_check_branch
      %47 = sbr.rel (0) target = $region25
    $region24: #{_lambda_.1} parent=1 // pred_region
      %49 = dma.done [#allocation4], 32768
    $region25: #{_lambda_.1} parent=1 // pred_fallthru
      _
    // Predicated region
    $region26: #{_lambda_.1} parent=1 // pred_check
      _
    $region27: #{_lambda_.1} parent=1 // pred_check_branch
      %51 = sbr.rel (0) target = $region29
    $region28: #{_lambda_.1} parent=1 // pred_region
      %53 = dma.done [#allocation6], 4096
    $region29: #{_lambda_.1} parent=1 // pred_fallthru
      _
    %p54 = scmp.eq.s32.totalorder 0, 0
    // Predicated region
    $region30: #{_lambda_.1} parent=1 // pred_check
      %p55 = pneg %p54
    $region31: #{_lambda_.1} parent=1 // pred_check_branch
      %57 = sbr.rel (%p55) target = $region33
    $region32: #{_lambda_.1} parent=1 // pred_region
      %58 = vst [vmem:[#allocation2] sm:$0xff] 0.0
      %59 = vst [vmem:[#allocation2 + $0x8] sm:$0xff] 0.0
    $region33: #{_lambda_.1} parent=1 // pred_fallthru
      _
    %v60 = vld [vmem:[#allocation2] sm:$0xff]
    %v61 = vld [vmem:[#allocation2 + $0x8] sm:$0xff]
    %v62 = vld [vmem:[%s0] sm:$0xff]
    %v63 = vld [vmem:[%s0 + $0x8] sm:$0xff]
    %v64 = vld [vmem:[%s0 + $0x10] sm:$0xff]
    %v65 = vld [vmem:[%s0 + $0x18] sm:$0xff]
    %v66 = vld [vmem:[%s0 + $0x20] sm:$0xff]
    %v67 = vld [vmem:[%s0 + $0x28] sm:$0xff]
    %v68 = vld [vmem:[%s0 + $0x30] sm:$0xff]
    %v69 = vld [vmem:[%s0 + $0x38] sm:$0xff]
    %v70 = vld [vmem:[#allocation3] sm:$0xff]
    %v71 = vld [vmem:[#allocation3 + $0x8] sm:$0xff]
    %v72 = vld [vmem:[#allocation3 + $0x10] sm:$0xff]
    %v73 = vld [vmem:[#allocation3 + $0x18] sm:$0xff]
    %v74 = vld [vmem:[#allocation3 + $0x20] sm:$0xff]
    %v75 = vld [vmem:[#allocation3 + $0x28] sm:$0xff]
    %v76 = vld [vmem:[#allocation3 + $0x30] sm:$0xff]
    %v77 = vld [vmem:[#allocation3 + $0x38] sm:$0xff]
    %v78 = vld [vmem:[#allocation3 + $0x40] sm:$0xff]
    %v79 = vld [vmem:[#allocation3 + $0x48] sm:$0xff]
    %v80 = vld [vmem:[#allocation3 + $0x50] sm:$0xff]
    %v81 = vld [vmem:[#allocation3 + $0x58] sm:$0xff]
    %v82 = vld [vmem:[#allocation3 + $0x60] sm:$0xff]
    %v83 = vld [vmem:[#allocation3 + $0x68] sm:$0xff]
    %v84 = vld [vmem:[#allocation3 + $0x70] sm:$0xff]
    %v85 = vld [vmem:[#allocation3 + $0x78] sm:$0xff]
    %v86 = vld [vmem:[#allocation3 + $0x80] sm:$0xff]
    %v87 = vld [vmem:[#allocation3 + $0x88] sm:$0xff]
    %v88 = vld [vmem:[#allocation3 + $0x90] sm:$0xff]
    %v89 = vld [vmem:[#allocation3 + $0x98] sm:$0xff]
    %v90 = vld [vmem:[#allocation3 + $0xa0] sm:$0xff]
    %v91 = vld [vmem:[#allocation3 + $0xa8] sm:$0xff]
    %v92 = vld [vmem:[#allocation3 + $0xb0] sm:$0xff]
    %v93 = vld [vmem:[#allocation3 + $0xb8] sm:$0xff]
    %v94 = vld [vmem:[#allocation3 + $0xc0] sm:$0xff]
    %v95 = vld [vmem:[#allocation3 + $0xc8] sm:$0xff]
    %v96 = vld [vmem:[#allocation3 + $0xd0] sm:$0xff]
    %v97 = vld [vmem:[#allocation3 + $0xd8] sm:$0xff]
    %v98 = vld [vmem:[#allocation3 + $0xe0] sm:$0xff]
    %v99 = vld [vmem:[#allocation3 + $0xe8] sm:$0xff]
    %v100 = vld [vmem:[#allocation3 + $0xf0] sm:$0xff]
    %v101 = vld [vmem:[#allocation3 + $0xf8] sm:$0xff]
    %v102 = vld [vmem:[#allocation3 + $0x100] sm:$0xff]
    %v103 = vld [vmem:[#allocation3 + $0x108] sm:$0xff]
    %v104 = vld [vmem:[#allocation3 + $0x110] sm:$0xff]
    %v105 = vld [vmem:[#allocation3 + $0x118] sm:$0xff]
    %v106 = vld [vmem:[#allocation3 + $0x120] sm:$0xff]
    %v107 = vld [vmem:[#allocation3 + $0x128] sm:$0xff]
    %v108 = vld [vmem:[#allocation3 + $0x130] sm:$0xff]
    %v109 = vld [vmem:[#allocation3 + $0x138] sm:$0xff]
    %v110 = vld [vmem:[#allocation3 + $0x140] sm:$0xff]
    %v111 = vld [vmem:[#allocation3 + $0x148] sm:$0xff]
    %v112 = vld [vmem:[#allocation3 + $0x150] sm:$0xff]
    %v113 = vld [vmem:[#allocation3 + $0x158] sm:$0xff]
    %v114 = vld [vmem:[#allocation3 + $0x160] sm:$0xff]
    %v115 = vld [vmem:[#allocation3 + $0x168] sm:$0xff]
    %v116 = vld [vmem:[#allocation3 + $0x170] sm:$0xff]
    %v117 = vld [vmem:[#allocation3 + $0x178] sm:$0xff]
    %v118 = vld [vmem:[#allocation3 + $0x180] sm:$0xff]
    %v119 = vld [vmem:[#allocation3 + $0x188] sm:$0xff]
    %v120 = vld [vmem:[#allocation3 + $0x190] sm:$0xff]
    %v121 = vld [vmem:[#allocation3 + $0x198] sm:$0xff]
    %v122 = vld [vmem:[#allocation3 + $0x1a0] sm:$0xff]
    %v123 = vld [vmem:[#allocation3 + $0x1a8] sm:$0xff]
    %v124 = vld [vmem:[#allocation3 + $0x1b0] sm:$0xff]
    %v125 = vld [vmem:[#allocation3 + $0x1b8] sm:$0xff]
    %v126 = vld [vmem:[#allocation3 + $0x1c0] sm:$0xff]
    %v127 = vld [vmem:[#allocation3 + $0x1c8] sm:$0xff]
    %v128 = vld [vmem:[#allocation3 + $0x1d0] sm:$0xff]
    %v129 = vld [vmem:[#allocation3 + $0x1d8] sm:$0xff]
    %v130 = vld [vmem:[#allocation3 + $0x1e0] sm:$0xff]
    %v131 = vld [vmem:[#allocation3 + $0x1e8] sm:$0xff]
    %v132 = vld [vmem:[#allocation3 + $0x1f0] sm:$0xff]
    %v133 = vld [vmem:[#allocation3 + $0x1f8] sm:$0xff]
    %v134 = vld [vmem:[#allocation3 + $0x200] sm:$0xff]
    %v135 = vld [vmem:[#allocation3 + $0x208] sm:$0xff]
    %v136 = vld [vmem:[#allocation3 + $0x210] sm:$0xff]
    %v137 = vld [vmem:[#allocation3 + $0x218] sm:$0xff]
    %v138 = vld [vmem:[#allocation3 + $0x220] sm:$0xff]
    %v139 = vld [vmem:[#allocation3 + $0x228] sm:$0xff]
    %v140 = vld [vmem:[#allocation3 + $0x230] sm:$0xff]
    %v141 = vld [vmem:[#allocation3 + $0x238] sm:$0xff]
    %v142 = vld [vmem:[#allocation3 + $0x240] sm:$0xff]
    %v143 = vld [vmem:[#allocation3 + $0x248] sm:$0xff]
    %v144 = vld [vmem:[#allocation3 + $0x250] sm:$0xff]
    %v145 = vld [vmem:[#allocation3 + $0x258] sm:$0xff]
    %v146 = vld [vmem:[#allocation3 + $0x260] sm:$0xff]
    %v147 = vld [vmem:[#allocation3 + $0x268] sm:$0xff]
    %v148 = vld [vmem:[#allocation3 + $0x270] sm:$0xff]
    %v149 = vld [vmem:[#allocation3 + $0x278] sm:$0xff]
    %v150 = vld [vmem:[#allocation3 + $0x280] sm:$0xff]
    %v151 = vld [vmem:[#allocation3 + $0x288] sm:$0xff]
    %v152 = vld [vmem:[#allocation3 + $0x290] sm:$0xff]
    %v153 = vld [vmem:[#allocation3 + $0x298] sm:$0xff]
    %v154 = vld [vmem:[#allocation3 + $0x2a0] sm:$0xff]
    %v155 = vld [vmem:[#allocation3 + $0x2a8] sm:$0xff]
    %v156 = vld [vmem:[#allocation3 + $0x2b0] sm:$0xff]
    %v157 = vld [vmem:[#allocation3 + $0x2b8] sm:$0xff]
    %v158 = vld [vmem:[#allocation3 + $0x2c0] sm:$0xff]
    %v159 = vld [vmem:[#allocation3 + $0x2c8] sm:$0xff]
    %v160 = vld [vmem:[#allocation3 + $0x2d0] sm:$0xff]
    %v161 = vld [vmem:[#allocation3 + $0x2d8] sm:$0xff]
    %v162 = vld [vmem:[#allocation3 + $0x2e0] sm:$0xff]
    %v163 = vld [vmem:[#allocation3 + $0x2e8] sm:$0xff]
    %v164 = vld [vmem:[#allocation3 + $0x2f0] sm:$0xff]
    %v165 = vld [vmem:[#allocation3 + $0x2f8] sm:$0xff]
    %v166 = vld [vmem:[#allocation3 + $0x300] sm:$0xff]
    %v167 = vld [vmem:[#allocation3 + $0x308] sm:$0xff]
    %v168 = vld [vmem:[#allocation3 + $0x310] sm:$0xff]
    %v169 = vld [vmem:[#allocation3 + $0x318] sm:$0xff]
    %v170 = vld [vmem:[#allocation3 + $0x320] sm:$0xff]
    %v171 = vld [vmem:[#allocation3 + $0x328] sm:$0xff]
    %v172 = vld [vmem:[#allocation3 + $0x330] sm:$0xff]
    %v173 = vld [vmem:[#allocation3 + $0x338] sm:$0xff]
    %v174 = vld [vmem:[#allocation3 + $0x340] sm:$0xff]
    %v175 = vld [vmem:[#allocation3 + $0x348] sm:$0xff]
    %v176 = vld [vmem:[#allocation3 + $0x350] sm:$0xff]
    %v177 = vld [vmem:[#allocation3 + $0x358] sm:$0xff]
    %v178 = vld [vmem:[#allocation3 + $0x360] sm:$0xff]
    %v179 = vld [vmem:[#allocation3 + $0x368] sm:$0xff]
    %v180 = vld [vmem:[#allocation3 + $0x370] sm:$0xff]
    %v181 = vld [vmem:[#allocation3 + $0x378] sm:$0xff]
    %v182 = vld [vmem:[#allocation3 + $0x380] sm:$0xff]
    %v183 = vld [vmem:[#allocation3 + $0x388] sm:$0xff]
    %v184 = vld [vmem:[#allocation3 + $0x390] sm:$0xff]
    %v185 = vld [vmem:[#allocation3 + $0x398] sm:$0xff]
    %v186 = vld [vmem:[#allocation3 + $0x3a0] sm:$0xff]
    %v187 = vld [vmem:[#allocation3 + $0x3a8] sm:$0xff]
    %v188 = vld [vmem:[#allocation3 + $0x3b0] sm:$0xff]
    %v189 = vld [vmem:[#allocation3 + $0x3b8] sm:$0xff]
    %v190 = vld [vmem:[#allocation3 + $0x3c0] sm:$0xff]
    %v191 = vld [vmem:[#allocation3 + $0x3c8] sm:$0xff]
    %v192 = vld [vmem:[#allocation3 + $0x3d0] sm:$0xff]
    %v193 = vld [vmem:[#allocation3 + $0x3d8] sm:$0xff]
    %v194 = vld [vmem:[#allocation3 + $0x3e0] sm:$0xff]
    %v195 = vld [vmem:[#allocation3 + $0x3e8] sm:$0xff]
    %v196 = vld [vmem:[#allocation3 + $0x3f0] sm:$0xff]
    %v197 = vld [vmem:[#allocation3 + $0x3f8] sm:$0xff]
    %v198 = vld [vmem:[#allocation3 + $0x400] sm:$0xff]
    %v199 = vld [vmem:[#allocation3 + $0x408] sm:$0xff]
    %v200 = vld [vmem:[#allocation3 + $0x410] sm:$0xff]
    %v201 = vld [vmem:[#allocation3 + $0x418] sm:$0xff]
    %v202 = vld [vmem:[#allocation3 + $0x420] sm:$0xff]
    %v203 = vld [vmem:[#allocation3 + $0x428] sm:$0xff]
    %v204 = vld [vmem:[#allocation3 + $0x430] sm:$0xff]
    %v205 = vld [vmem:[#allocation3 + $0x438] sm:$0xff]
    %v206 = vld [vmem:[#allocation3 + $0x440] sm:$0xff]
    %v207 = vld [vmem:[#allocation3 + $0x448] sm:$0xff]
    %v208 = vld [vmem:[#allocation3 + $0x450] sm:$0xff]
    %v209 = vld [vmem:[#allocation3 + $0x458] sm:$0xff]
    %v210 = vld [vmem:[#allocation3 + $0x460] sm:$0xff]
    %v211 = vld [vmem:[#allocation3 + $0x468] sm:$0xff]
    %v212 = vld [vmem:[#allocation3 + $0x470] sm:$0xff]
    %v213 = vld [vmem:[#allocation3 + $0x478] sm:$0xff]
    %v214 = vld [vmem:[#allocation3 + $0x480] sm:$0xff]
    %v215 = vld [vmem:[#allocation3 + $0x488] sm:$0xff]
    %v216 = vld [vmem:[#allocation3 + $0x490] sm:$0xff]
    %v217 = vld [vmem:[#allocation3 + $0x498] sm:$0xff]
    %v218 = vld [vmem:[#allocation3 + $0x4a0] sm:$0xff]
    %v219 = vld [vmem:[#allocation3 + $0x4a8] sm:$0xff]
    %v220 = vld [vmem:[#allocation3 + $0x4b0] sm:$0xff]
    %v221 = vld [vmem:[#allocation3 + $0x4b8] sm:$0xff]
    %v222 = vld [vmem:[#allocation3 + $0x4c0] sm:$0xff]
    %v223 = vld [vmem:[#allocation3 + $0x4c8] sm:$0xff]
    %v224 = vld [vmem:[#allocation3 + $0x4d0] sm:$0xff]
    %v225 = vld [vmem:[#allocation3 + $0x4d8] sm:$0xff]
    %v226 = vld [vmem:[#allocation3 + $0x4e0] sm:$0xff]
    %v227 = vld [vmem:[#allocation3 + $0x4e8] sm:$0xff]
    %v228 = vld [vmem:[#allocation3 + $0x4f0] sm:$0xff]
    %v229 = vld [vmem:[#allocation3 + $0x4f8] sm:$0xff]
    %v230 = vld [vmem:[#allocation3 + $0x500] sm:$0xff]
    %v231 = vld [vmem:[#allocation3 + $0x508] sm:$0xff]
    %v232 = vld [vmem:[#allocation3 + $0x510] sm:$0xff]
    %v233 = vld [vmem:[#allocation3 + $0x518] sm:$0xff]
    %v234 = vld [vmem:[#allocation3 + $0x520] sm:$0xff]
    %v235 = vld [vmem:[#allocation3 + $0x528] sm:$0xff]
    %v236 = vld [vmem:[#allocation3 + $0x530] sm:$0xff]
    %v237 = vld [vmem:[#allocation3 + $0x538] sm:$0xff]
    %v238 = vld [vmem:[#allocation3 + $0x540] sm:$0xff]
    %v239 = vld [vmem:[#allocation3 + $0x548] sm:$0xff]
    %v240 = vld [vmem:[#allocation3 + $0x550] sm:$0xff]
    %v241 = vld [vmem:[#allocation3 + $0x558] sm:$0xff]
    %v242 = vld [vmem:[#allocation3 + $0x560] sm:$0xff]
    %v243 = vld [vmem:[#allocation3 + $0x568] sm:$0xff]
    %v244 = vld [vmem:[#allocation3 + $0x570] sm:$0xff]
    %v245 = vld [vmem:[#allocation3 + $0x578] sm:$0xff]
    %v246 = vld [vmem:[#allocation3 + $0x580] sm:$0xff]
    %v247 = vld [vmem:[#allocation3 + $0x588] sm:$0xff]
    %v248 = vld [vmem:[#allocation3 + $0x590] sm:$0xff]
    %v249 = vld [vmem:[#allocation3 + $0x598] sm:$0xff]
    %v250 = vld [vmem:[#allocation3 + $0x5a0] sm:$0xff]
    %v251 = vld [vmem:[#allocation3 + $0x5a8] sm:$0xff]
    %v252 = vld [vmem:[#allocation3 + $0x5b0] sm:$0xff]
    %v253 = vld [vmem:[#allocation3 + $0x5b8] sm:$0xff]
    %v254 = vld [vmem:[#allocation3 + $0x5c0] sm:$0xff]
    %v255 = vld [vmem:[#allocation3 + $0x5c8] sm:$0xff]
    %v256 = vld [vmem:[#allocation3 + $0x5d0] sm:$0xff]
    %v257 = vld [vmem:[#allocation3 + $0x5d8] sm:$0xff]
    %v258 = vld [vmem:[#allocation3 + $0x5e0] sm:$0xff]
    %v259 = vld [vmem:[#allocation3 + $0x5e8] sm:$0xff]
    %v260 = vld [vmem:[#allocation3 + $0x5f0] sm:$0xff]
    %v261 = vld [vmem:[#allocation3 + $0x5f8] sm:$0xff]
    %v262 = vld [vmem:[#allocation3 + $0x600] sm:$0xff]
    %v263 = vld [vmem:[#allocation3 + $0x608] sm:$0xff]
    %v264 = vld [vmem:[#allocation3 + $0x610] sm:$0xff]
    %v265 = vld [vmem:[#allocation3 + $0x618] sm:$0xff]
    %v266 = vld [vmem:[#allocation3 + $0x620] sm:$0xff]
    %v267 = vld [vmem:[#allocation3 + $0x628] sm:$0xff]
    %v268 = vld [vmem:[#allocation3 + $0x630] sm:$0xff]
    %v269 = vld [vmem:[#allocation3 + $0x638] sm:$0xff]
    %v270 = vld [vmem:[#allocation3 + $0x640] sm:$0xff]
    %v271 = vld [vmem:[#allocation3 + $0x648] sm:$0xff]
    %v272 = vld [vmem:[#allocation3 + $0x650] sm:$0xff]
    %v273 = vld [vmem:[#allocation3 + $0x658] sm:$0xff]
    %v274 = vld [vmem:[#allocation3 + $0x660] sm:$0xff]
    %v275 = vld [vmem:[#allocation3 + $0x668] sm:$0xff]
    %v276 = vld [vmem:[#allocation3 + $0x670] sm:$0xff]
    %v277 = vld [vmem:[#allocation3 + $0x678] sm:$0xff]
    %v278 = vld [vmem:[#allocation3 + $0x680] sm:$0xff]
    %v279 = vld [vmem:[#allocation3 + $0x688] sm:$0xff]
    %v280 = vld [vmem:[#allocation3 + $0x690] sm:$0xff]
    %v281 = vld [vmem:[#allocation3 + $0x698] sm:$0xff]
    %v282 = vld [vmem:[#allocation3 + $0x6a0] sm:$0xff]
    %v283 = vld [vmem:[#allocation3 + $0x6a8] sm:$0xff]
    %v284 = vld [vmem:[#allocation3 + $0x6b0] sm:$0xff]
    %v285 = vld [vmem:[#allocation3 + $0x6b8] sm:$0xff]
    %v286 = vld [vmem:[#allocation3 + $0x6c0] sm:$0xff]
    %v287 = vld [vmem:[#allocation3 + $0x6c8] sm:$0xff]
    %v288 = vld [vmem:[#allocation3 + $0x6d0] sm:$0xff]
    %v289 = vld [vmem:[#allocation3 + $0x6d8] sm:$0xff]
    %v290 = vld [vmem:[#allocation3 + $0x6e0] sm:$0xff]
    %v291 = vld [vmem:[#allocation3 + $0x6e8] sm:$0xff]
    %v292 = vld [vmem:[#allocation3 + $0x6f0] sm:$0xff]
    %v293 = vld [vmem:[#allocation3 + $0x6f8] sm:$0xff]
    %v294 = vld [vmem:[#allocation3 + $0x700] sm:$0xff]
    %v295 = vld [vmem:[#allocation3 + $0x708] sm:$0xff]
    %v296 = vld [vmem:[#allocation3 + $0x710] sm:$0xff]
    %v297 = vld [vmem:[#allocation3 + $0x718] sm:$0xff]
    %v298 = vld [vmem:[#allocation3 + $0x720] sm:$0xff]
    %v299 = vld [vmem:[#allocation3 + $0x728] sm:$0xff]
    %v300 = vld [vmem:[#allocation3 + $0x730] sm:$0xff]
    %v301 = vld [vmem:[#allocation3 + $0x738] sm:$0xff]
    %v302 = vld [vmem:[#allocation3 + $0x740] sm:$0xff]
    %v303 = vld [vmem:[#allocation3 + $0x748] sm:$0xff]
    %v304 = vld [vmem:[#allocation3 + $0x750] sm:$0xff]
    %v305 = vld [vmem:[#allocation3 + $0x758] sm:$0xff]
    %v306 = vld [vmem:[#allocation3 + $0x760] sm:$0xff]
    %v307 = vld [vmem:[#allocation3 + $0x768] sm:$0xff]
    %v308 = vld [vmem:[#allocation3 + $0x770] sm:$0xff]
    %v309 = vld [vmem:[#allocation3 + $0x778] sm:$0xff]
    %v310 = vld [vmem:[#allocation3 + $0x780] sm:$0xff]
    %v311 = vld [vmem:[#allocation3 + $0x788] sm:$0xff]
    %v312 = vld [vmem:[#allocation3 + $0x790] sm:$0xff]
    %v313 = vld [vmem:[#allocation3 + $0x798] sm:$0xff]
    %v314 = vld [vmem:[#allocation3 + $0x7a0] sm:$0xff]
    %v315 = vld [vmem:[#allocation3 + $0x7a8] sm:$0xff]
    %v316 = vld [vmem:[#allocation3 + $0x7b0] sm:$0xff]
    %v317 = vld [vmem:[#allocation3 + $0x7b8] sm:$0xff]
    %v318 = vld [vmem:[#allocation3 + $0x7c0] sm:$0xff]
    %v319 = vld [vmem:[#allocation3 + $0x7c8] sm:$0xff]
    %v320 = vld [vmem:[#allocation3 + $0x7d0] sm:$0xff]
    %v321 = vld [vmem:[#allocation3 + $0x7d8] sm:$0xff]
    %v322 = vld [vmem:[#allocation3 + $0x7e0] sm:$0xff]
    %v323 = vld [vmem:[#allocation3 + $0x7e8] sm:$0xff]
    %v324 = vld [vmem:[#allocation3 + $0x7f0] sm:$0xff]
    %v325 = vld [vmem:[#allocation3 + $0x7f8] sm:$0xff]
    %326 = vmatpush.msra.mxu0 %v100
    %327 = vmatpush.msra.mxu0 %v98
    %328 = vmatpush.msra.mxu0 %v96
    %329 = vmatpush.msra.mxu0 %v94
    %330 = vmatpush.msra.mxu0 %v92
    %331 = vmatpush.msra.mxu0 %v90
    %332 = vmatpush.msra.mxu0 %v88
    %333 = vmatpush.msra.mxu0 %v86
    %334 = vmatpush.msra.mxu0 %v84
    %335 = vmatpush.msra.mxu0 %v82
    %336 = vmatpush.msra.mxu0 %v80
    %337 = vmatpush.msra.mxu0 %v78
    %338 = vmatpush.msra.mxu0 %v76
    %339 = vmatpush.msra.mxu0 %v74
    %340 = vmatpush.msra.mxu0 %v72
    %341 = vmatpush.msra.mxu0 %v70
    %342 = vmatmul.f32.gmra.mxu0 %v62
    %v343 = vpop.f32.mrf.mxu0
    %v344 = vadd.f32 0.0, %v343
    %345 = vdwg.mxu0
    %346 = vmatpush.msra.mxu0 %v132
    %347 = vmatpush.msra.mxu0 %v130
    %348 = vmatpush.msra.mxu0 %v128
    %349 = vmatpush.msra.mxu0 %v126
    %350 = vmatpush.msra.mxu0 %v124
    %351 = vmatpush.msra.mxu0 %v122
    %352 = vmatpush.msra.mxu0 %v120
    %353 = vmatpush.msra.mxu0 %v118
    %354 = vmatpush.msra.mxu0 %v116
    %355 = vmatpush.msra.mxu0 %v114
    %356 = vmatpush.msra.mxu0 %v112
    %357 = vmatpush.msra.mxu0 %v110
    %358 = vmatpush.msra.mxu0 %v108
    %359 = vmatpush.msra.mxu0 %v106
    %360 = vmatpush.msra.mxu0 %v104
    %361 = vmatpush.msra.mxu0 %v102
    %362 = vmatmul.f32.gmra.mxu0 %v63
    %v363 = vpop.f32.mrf.mxu0
    %v364 = vadd.f32 %v344, %v363
    %365 = vdwg.mxu0
    %366 = vmatpush.msra.mxu0 %v164
    %367 = vmatpush.msra.mxu0 %v162
    %368 = vmatpush.msra.mxu0 %v160
    %369 = vmatpush.msra.mxu0 %v158
    %370 = vmatpush.msra.mxu0 %v156
    %371 = vmatpush.msra.mxu0 %v154
    %372 = vmatpush.msra.mxu0 %v152
    %373 = vmatpush.msra.mxu0 %v150
    %374 = vmatpush.msra.mxu0 %v148
    %375 = vmatpush.msra.mxu0 %v146
    %376 = vmatpush.msra.mxu0 %v144
    %377 = vmatpush.msra.mxu0 %v142
    %378 = vmatpush.msra.mxu0 %v140
    %379 = vmatpush.msra.mxu0 %v138
    %380 = vmatpush.msra.mxu0 %v136
    %381 = vmatpush.msra.mxu0 %v134
    %382 = vmatmul.f32.gmra.mxu0 %v64
    %v383 = vpop.f32.mrf.mxu0
    %v384 = vadd.f32 %v364, %v383
    %385 = vdwg.mxu0
    %386 = vmatpush.msra.mxu0 %v196
    %387 = vmatpush.msra.mxu0 %v194
    %388 = vmatpush.msra.mxu0 %v192
    %389 = vmatpush.msra.mxu0 %v190
    %390 = vmatpush.msra.mxu0 %v188
    %391 = vmatpush.msra.mxu0 %v186
    %392 = vmatpush.msra.mxu0 %v184
    %393 = vmatpush.msra.mxu0 %v182
    %394 = vmatpush.msra.mxu0 %v180
    %395 = vmatpush.msra.mxu0 %v178
    %396 = vmatpush.msra.mxu0 %v176
    %397 = vmatpush.msra.mxu0 %v174
    %398 = vmatpush.msra.mxu0 %v172
    %399 = vmatpush.msra.mxu0 %v170
    %400 = vmatpush.msra.mxu0 %v168
    %401 = vmatpush.msra.mxu0 %v166
    %402 = vmatmul.f32.gmra.mxu0 %v65
    %v403 = vpop.f32.mrf.mxu0
    %v404 = vadd.f32 %v384, %v403
    %405 = vdwg.mxu0
    %406 = vmatpush.msra.mxu0 %v228
    %407 = vmatpush.msra.mxu0 %v226
    %408 = vmatpush.msra.mxu0 %v224
    %409 = vmatpush.msra.mxu0 %v222
    %410 = vmatpush.msra.mxu0 %v220
    %411 = vmatpush.msra.mxu0 %v218
    %412 = vmatpush.msra.mxu0 %v216
    %413 = vmatpush.msra.mxu0 %v214
    %414 = vmatpush.msra.mxu0 %v212
    %415 = vmatpush.msra.mxu0 %v210
    %416 = vmatpush.msra.mxu0 %v208
    %417 = vmatpush.msra.mxu0 %v206
    %418 = vmatpush.msra.mxu0 %v204
    %419 = vmatpush.msra.mxu0 %v202
    %420 = vmatpush.msra.mxu0 %v200
    %421 = vmatpush.msra.mxu0 %v198
    %422 = vmatmul.f32.gmra.mxu0 %v66
    %v423 = vpop.f32.mrf.mxu0
    %v424 = vadd.f32 %v404, %v423
    %425 = vdwg.mxu0
    %426 = vmatpush.msra.mxu0 %v260
    %427 = vmatpush.msra.mxu0 %v258
    %428 = vmatpush.msra.mxu0 %v256
    %429 = vmatpush.msra.mxu0 %v254
    %430 = vmatpush.msra.mxu0 %v252
    %431 = vmatpush.msra.mxu0 %v250
    %432 = vmatpush.msra.mxu0 %v248
    %433 = vmatpush.msra.mxu0 %v246
    %434 = vmatpush.msra.mxu0 %v244
    %435 = vmatpush.msra.mxu0 %v242
    %436 = vmatpush.msra.mxu0 %v240
    %437 = vmatpush.msra.mxu0 %v238
    %438 = vmatpush.msra.mxu0 %v236
    %439 = vmatpush.msra.mxu0 %v234
    %440 = vmatpush.msra.mxu0 %v232
    %441 = vmatpush.msra.mxu0 %v230
    %442 = vmatmul.f32.gmra.mxu0 %v67
    %v443 = vpop.f32.mrf.mxu0
    %v444 = vadd.f32 %v424, %v443
    %445 = vdwg.mxu0
    %446 = vmatpush.msra.mxu0 %v292
    %447 = vmatpush.msra.mxu0 %v290
    %448 = vmatpush.msra.mxu0 %v288
    %449 = vmatpush.msra.mxu0 %v286
    %450 = vmatpush.msra.mxu0 %v284
    %451 = vmatpush.msra.mxu0 %v282
    %452 = vmatpush.msra.mxu0 %v280
    %453 = vmatpush.msra.mxu0 %v278
    %454 = vmatpush.msra.mxu0 %v276
    %455 = vmatpush.msra.mxu0 %v274
    %456 = vmatpush.msra.mxu0 %v272
    %457 = vmatpush.msra.mxu0 %v270
    %458 = vmatpush.msra.mxu0 %v268
    %459 = vmatpush.msra.mxu0 %v266
    %460 = vmatpush.msra.mxu0 %v264
    %461 = vmatpush.msra.mxu0 %v262
    %462 = vmatmul.f32.gmra.mxu0 %v68
    %v463 = vpop.f32.mrf.mxu0
    %v464 = vadd.f32 %v444, %v463
    %465 = vdwg.mxu0
    %466 = vmatpush.msra.mxu0 %v324
    %467 = vmatpush.msra.mxu0 %v322
    %468 = vmatpush.msra.mxu0 %v320
    %469 = vmatpush.msra.mxu0 %v318
    %470 = vmatpush.msra.mxu0 %v316
    %471 = vmatpush.msra.mxu0 %v314
    %472 = vmatpush.msra.mxu0 %v312
    %473 = vmatpush.msra.mxu0 %v310
    %474 = vmatpush.msra.mxu0 %v308
    %475 = vmatpush.msra.mxu0 %v306
    %476 = vmatpush.msra.mxu0 %v304
    %477 = vmatpush.msra.mxu0 %v302
    %478 = vmatpush.msra.mxu0 %v300
    %479 = vmatpush.msra.mxu0 %v298
    %480 = vmatpush.msra.mxu0 %v296
    %481 = vmatpush.msra.mxu0 %v294
    %482 = vmatmul.f32.gmra.mxu0 %v69
    %v483 = vpop.f32.mrf.mxu0
    %v484 = vadd.f32 %v464, %v483
    %485 = vdwg.mxu0
    %486 = vmatpush.msra.mxu0 %v101
    %487 = vmatpush.msra.mxu0 %v99
    %488 = vmatpush.msra.mxu0 %v97
    %489 = vmatpush.msra.mxu0 %v95
    %490 = vmatpush.msra.mxu0 %v93
    %491 = vmatpush.msra.mxu0 %v91
    %492 = vmatpush.msra.mxu0 %v89
    %493 = vmatpush.msra.mxu0 %v87
    %494 = vmatpush.msra.mxu0 %v85
    %495 = vmatpush.msra.mxu0 %v83
    %496 = vmatpush.msra.mxu0 %v81
    %497 = vmatpush.msra.mxu0 %v79
    %498 = vmatpush.msra.mxu0 %v77
    %499 = vmatpush.msra.mxu0 %v75
    %500 = vmatpush.msra.mxu0 %v73
    %501 = vmatpush.msra.mxu0 %v71
    %502 = vmatmul.f32.gmra.mxu0 %v62
    %v503 = vpop.f32.mrf.mxu0
    %v504 = vadd.f32 0.0, %v503
    %505 = vdwg.mxu0
    %506 = vmatpush.msra.mxu0 %v133
    %507 = vmatpush.msra.mxu0 %v131
    %508 = vmatpush.msra.mxu0 %v129
    %509 = vmatpush.msra.mxu0 %v127
    %510 = vmatpush.msra.mxu0 %v125
    %511 = vmatpush.msra.mxu0 %v123
    %512 = vmatpush.msra.mxu0 %v121
    %513 = vmatpush.msra.mxu0 %v119
    %514 = vmatpush.msra.mxu0 %v117
    %515 = vmatpush.msra.mxu0 %v115
    %516 = vmatpush.msra.mxu0 %v113
    %517 = vmatpush.msra.mxu0 %v111
    %518 = vmatpush.msra.mxu0 %v109
    %519 = vmatpush.msra.mxu0 %v107
    %520 = vmatpush.msra.mxu0 %v105
    %521 = vmatpush.msra.mxu0 %v103
    %522 = vmatmul.f32.gmra.mxu0 %v63
    %v523 = vpop.f32.mrf.mxu0
    %v524 = vadd.f32 %v504, %v523
    %525 = vdwg.mxu0
    %526 = vmatpush.msra.mxu0 %v165
    %527 = vmatpush.msra.mxu0 %v163
    %528 = vmatpush.msra.mxu0 %v161
    %529 = vmatpush.msra.mxu0 %v159
    %530 = vmatpush.msra.mxu0 %v157
    %531 = vmatpush.msra.mxu0 %v155
    %532 = vmatpush.msra.mxu0 %v153
    %533 = vmatpush.msra.mxu0 %v151
    %534 = vmatpush.msra.mxu0 %v149
    %535 = vmatpush.msra.mxu0 %v147
    %536 = vmatpush.msra.mxu0 %v145
    %537 = vmatpush.msra.mxu0 %v143
    %538 = vmatpush.msra.mxu0 %v141
    %539 = vmatpush.msra.mxu0 %v139
    %540 = vmatpush.msra.mxu0 %v137
    %541 = vmatpush.msra.mxu0 %v135
    %542 = vmatmul.f32.gmra.mxu0 %v64
    %v543 = vpop.f32.mrf.mxu0
    %v544 = vadd.f32 %v524, %v543
    %545 = vdwg.mxu0
    %546 = vmatpush.msra.mxu0 %v197
    %547 = vmatpush.msra.mxu0 %v195
    %548 = vmatpush.msra.mxu0 %v193
    %549 = vmatpush.msra.mxu0 %v191
    %550 = vmatpush.msra.mxu0 %v189
    %551 = vmatpush.msra.mxu0 %v187
    %552 = vmatpush.msra.mxu0 %v185
    %553 = vmatpush.msra.mxu0 %v183
    %554 = vmatpush.msra.mxu0 %v181
    %555 = vmatpush.msra.mxu0 %v179
    %556 = vmatpush.msra.mxu0 %v177
    %557 = vmatpush.msra.mxu0 %v175
    %558 = vmatpush.msra.mxu0 %v173
    %559 = vmatpush.msra.mxu0 %v171
    %560 = vmatpush.msra.mxu0 %v169
    %561 = vmatpush.msra.mxu0 %v167
    %562 = vmatmul.f32.gmra.mxu0 %v65
    %v563 = vpop.f32.mrf.mxu0
    %v564 = vadd.f32 %v544, %v563
    %565 = vdwg.mxu0
    %566 = vmatpush.msra.mxu0 %v229
    %567 = vmatpush.msra.mxu0 %v227
    %568 = vmatpush.msra.mxu0 %v225
    %569 = vmatpush.msra.mxu0 %v223
    %570 = vmatpush.msra.mxu0 %v221
    %571 = vmatpush.msra.mxu0 %v219
    %572 = vmatpush.msra.mxu0 %v217
    %573 = vmatpush.msra.mxu0 %v215
    %574 = vmatpush.msra.mxu0 %v213
    %575 = vmatpush.msra.mxu0 %v211
    %576 = vmatpush.msra.mxu0 %v209
    %577 = vmatpush.msra.mxu0 %v207
    %578 = vmatpush.msra.mxu0 %v205
    %579 = vmatpush.msra.mxu0 %v203
    %580 = vmatpush.msra.mxu0 %v201
    %581 = vmatpush.msra.mxu0 %v199
    %582 = vmatmul.f32.gmra.mxu0 %v66
    %v583 = vpop.f32.mrf.mxu0
    %v584 = vadd.f32 %v564, %v583
    %585 = vdwg.mxu0
    %586 = vmatpush.msra.mxu0 %v261
    %587 = vmatpush.msra.mxu0 %v259
    %588 = vmatpush.msra.mxu0 %v257
    %589 = vmatpush.msra.mxu0 %v255
    %590 = vmatpush.msra.mxu0 %v253
    %591 = vmatpush.msra.mxu0 %v251
    %592 = vmatpush.msra.mxu0 %v249
    %593 = vmatpush.msra.mxu0 %v247
    %594 = vmatpush.msra.mxu0 %v245
    %595 = vmatpush.msra.mxu0 %v243
    %596 = vmatpush.msra.mxu0 %v241
    %597 = vmatpush.msra.mxu0 %v239
    %598 = vmatpush.msra.mxu0 %v237
    %599 = vmatpush.msra.mxu0 %v235
    %600 = vmatpush.msra.mxu0 %v233
    %601 = vmatpush.msra.mxu0 %v231
    %602 = vmatmul.f32.gmra.mxu0 %v67
    %v603 = vpop.f32.mrf.mxu0
    %v604 = vadd.f32 %v584, %v603
    %605 = vdwg.mxu0
    %606 = vmatpush.msra.mxu0 %v293
    %607 = vmatpush.msra.mxu0 %v291
    %608 = vmatpush.msra.mxu0 %v289
    %609 = vmatpush.msra.mxu0 %v287
    %610 = vmatpush.msra.mxu0 %v285
    %611 = vmatpush.msra.mxu0 %v283
    %612 = vmatpush.msra.mxu0 %v281
    %613 = vmatpush.msra.mxu0 %v279
    %614 = vmatpush.msra.mxu0 %v277
    %615 = vmatpush.msra.mxu0 %v275
    %616 = vmatpush.msra.mxu0 %v273
    %617 = vmatpush.msra.mxu0 %v271
    %618 = vmatpush.msra.mxu0 %v269
    %619 = vmatpush.msra.mxu0 %v267
    %620 = vmatpush.msra.mxu0 %v265
    %621 = vmatpush.msra.mxu0 %v263
    %622 = vmatmul.f32.gmra.mxu0 %v68
    %v623 = vpop.f32.mrf.mxu0
    %v624 = vadd.f32 %v604, %v623
    %625 = vdwg.mxu0
    %626 = vmatpush.msra.mxu0 %v325
    %627 = vmatpush.msra.mxu0 %v323
    %628 = vmatpush.msra.mxu0 %v321
    %629 = vmatpush.msra.mxu0 %v319
    %630 = vmatpush.msra.mxu0 %v317
    %631 = vmatpush.msra.mxu0 %v315
    %632 = vmatpush.msra.mxu0 %v313
    %633 = vmatpush.msra.mxu0 %v311
    %634 = vmatpush.msra.mxu0 %v309
    %635 = vmatpush.msra.mxu0 %v307
    %636 = vmatpush.msra.mxu0 %v305
    %637 = vmatpush.msra.mxu0 %v303
    %638 = vmatpush.msra.mxu0 %v301
    %639 = vmatpush.msra.mxu0 %v299
    %640 = vmatpush.msra.mxu0 %v297
    %641 = vmatpush.msra.mxu0 %v295
    %642 = vmatmul.f32.gmra.mxu0 %v69
    %v643 = vpop.f32.mrf.mxu0
    %v644 = vadd.f32 %v624, %v643
    %645 = vdwg.mxu0
    %v646 = vadd.f32 %v60, %v484
    %v647 = vadd.f32 %v61, %v644
    %648 = vst [vmem:[#allocation2] sm:$0xff] %v646
    %649 = vst [vmem:[#allocation2 + $0x8] sm:$0xff] %v647
    // Predicated region
    $region34: #{_lambda_.1} parent=1 // pred_check
      %p650 = pneg %p54
    $region35: #{_lambda_.1} parent=1 // pred_check_branch
      %652 = sbr.rel (%p650) target = $region37
    $region36: #{_lambda_.1} parent=1 // pred_region
      %v653 = vld [vmem:[#allocation2] sm:$0xff]
      %v654 = vld [vmem:[#allocation2 + $0x8] sm:$0xff]
      %v655 = vld [vmem:[%s2] sm:$0x3]
      %v657 = vperm.slane %v655, 0
      %v658 = vperm.slane %v655, 1
      %v661 = vadd.f32 %v653, %v657
      %v662 = vadd.f32 %v654, %v658
      %v663 = vmax.f32 %v661, 0.0
      %v664 = vmax.f32 %v662, 0.0
      %665 = vst [vmem:[%s6] sm:$0xff] %v663
      %666 = vst [vmem:[%s6 + $0x8] sm:$0xff] %v664
      %v667 = vld [vmem:[#allocation5] sm:$0xff]
      %v668 = vld [vmem:[#allocation5 + $0x8] sm:$0xff]
      %v669 = vld [vmem:[#allocation5 + $0x10] sm:$0xff]
      %v670 = vld [vmem:[#allocation5 + $0x18] sm:$0xff]
      %v671 = vld [vmem:[#allocation5 + $0x20] sm:$0xff]
      %v672 = vld [vmem:[#allocation5 + $0x28] sm:$0xff]
      %v673 = vld [vmem:[#allocation5 + $0x30] sm:$0xff]
      %v674 = vld [vmem:[#allocation5 + $0x38] sm:$0xff]
      %v675 = vld [vmem:[#allocation5 + $0x40] sm:$0xff]
      %v676 = vld [vmem:[#allocation5 + $0x48] sm:$0xff]
      %v677 = vld [vmem:[#allocation5 + $0x50] sm:$0xff]
      %v678 = vld [vmem:[#allocation5 + $0x58] sm:$0xff]
      %v679 = vld [vmem:[#allocation5 + $0x60] sm:$0xff]
      %v680 = vld [vmem:[#allocation5 + $0x68] sm:$0xff]
      %v681 = vld [vmem:[#allocation5 + $0x70] sm:$0xff]
      %v682 = vld [vmem:[#allocation5 + $0x78] sm:$0xff]
      %v683 = vld [vmem:[#allocation5 + $0x80] sm:$0xff]
      %v684 = vld [vmem:[#allocation5 + $0x88] sm:$0xff]
      %v685 = vld [vmem:[#allocation5 + $0x90] sm:$0xff]
      %v686 = vld [vmem:[#allocation5 + $0x98] sm:$0xff]
      %v687 = vld [vmem:[#allocation5 + $0xa0] sm:$0xff]
      %v688 = vld [vmem:[#allocation5 + $0xa8] sm:$0xff]
      %v689 = vld [vmem:[#allocation5 + $0xb0] sm:$0xff]
      %v690 = vld [vmem:[#allocation5 + $0xb8] sm:$0xff]
      %v691 = vld [vmem:[#allocation5 + $0xc0] sm:$0xff]
      %v692 = vld [vmem:[#allocation5 + $0xc8] sm:$0xff]
      %v693 = vld [vmem:[#allocation5 + $0xd0] sm:$0xff]
      %v694 = vld [vmem:[#allocation5 + $0xd8] sm:$0xff]
      %v695 = vld [vmem:[#allocation5 + $0xe0] sm:$0xff]
      %v696 = vld [vmem:[#allocation5 + $0xe8] sm:$0xff]
      %v697 = vld [vmem:[#allocation5 + $0xf0] sm:$0xff]
      %v698 = vld [vmem:[#allocation5 + $0xf8] sm:$0xff]
      %v699 = vld [vmem:[%s4] sm:$0x1]
      %v701 = vperm.slane %v699, 0
      %703 = vmatpush.msra.mxu0 %v682
      %704 = vmatpush.msra.mxu0 %v681
      %705 = vmatpush.msra.mxu0 %v680
      %706 = vmatpush.msra.mxu0 %v679
      %707 = vmatpush.msra.mxu0 %v678
      %708 = vmatpush.msra.mxu0 %v677
      %709 = vmatpush.msra.mxu0 %v676
      %710 = vmatpush.msra.mxu0 %v675
      %711 = vmatpush.msra.mxu0 %v674
      %712 = vmatpush.msra.mxu0 %v673
      %713 = vmatpush.msra.mxu0 %v672
      %714 = vmatpush.msra.mxu0 %v671
      %715 = vmatpush.msra.mxu0 %v670
      %716 = vmatpush.msra.mxu0 %v669
      %717 = vmatpush.msra.mxu0 %v668
      %718 = vmatpush.msra.mxu0 %v667
      %719 = vmatmul.f32.gmra.mxu0 %v663
      %v720 = vpop.f32.mrf.mxu0
      %v721 = vadd.f32 %v701, %v720
      %722 = vdwg.mxu0
      %723 = vmatpush.msra.mxu0 %v698
      %724 = vmatpush.msra.mxu0 %v697
      %725 = vmatpush.msra.mxu0 %v696
      %726 = vmatpush.msra.mxu0 %v695
      %727 = vmatpush.msra.mxu0 %v694
      %728 = vmatpush.msra.mxu0 %v693
      %729 = vmatpush.msra.mxu0 %v692
      %730 = vmatpush.msra.mxu0 %v691
      %731 = vmatpush.msra.mxu0 %v690
      %732 = vmatpush.msra.mxu0 %v689
      %733 = vmatpush.msra.mxu0 %v688
      %734 = vmatpush.msra.mxu0 %v687
      %735 = vmatpush.msra.mxu0 %v686
      %736 = vmatpush.msra.mxu0 %v685
      %737 = vmatpush.msra.mxu0 %v684
      %738 = vmatpush.msra.mxu0 %v683
      %739 = vmatmul.f32.gmra.mxu0 %v664
      %v740 = vpop.f32.mrf.mxu0
      %v741 = vadd.f32 %v721, %v740
      %742 = vdwg.mxu0
      %743 = vst [vmem:[%s5] sm:$0xff] %v741
    $region37: #{_lambda_.1} parent=1 // pred_fallthru
      _
    // Predicated region
    $region38: #{_lambda_.1} parent=1 // pred_check
      _
    $region39: #{_lambda_.1} parent=1 // pred_check_branch
      %745 = sbr.rel (0) target = $region41
    $region40: #{_lambda_.1} parent=1 // pred_region
      _
    $region41: #{_lambda_.1} parent=1 // pred_fallthru
      _
    // Predicated region
    $region42: #{_lambda_.1} parent=1 // pred_check
      _
    $region43: #{_lambda_.1} parent=1 // pred_check_branch
      %747 = sbr.rel (0) target = $region45
    $region44: #{_lambda_.1} parent=1 // pred_region
      _
    $region45: #{_lambda_.1} parent=1 // pred_fallthru
      _
    // Predicated region
    $region46: #{_lambda_.1} parent=1 // pred_check
      _
    $region47: #{_lambda_.1} parent=1 // pred_check_branch
      %749 = sbr.rel (0) target = $region49
    $region48: #{_lambda_.1} parent=1 // pred_region
      _
    $region49: #{_lambda_.1} parent=1 // pred_fallthru
      _
    // Predicated region
    $region50: #{_lambda_.1} parent=1 // pred_check
      _
    $region51: #{_lambda_.1} parent=1 // pred_check_branch
      %751 = sbr.rel (0) target = $region53
    $region52: #{_lambda_.1} parent=1 // pred_region
      _
    $region53: #{_lambda_.1} parent=1 // pred_fallthru
      _
    %752 = vsyncpa [#allocation4], 1
    %753 = vsyncpa [#allocation6], 1

</llo_original>
